<compile_context>
chip_gen: v6e
topology: v6e:2x2x1
jax: 0.10.0
libtpu: 0.0.40
codegen_flags: <defaults>
</compile_context>

<pallas_src>
import jax
import jax.numpy as jnp
import numpy as np
from jax.experimental import pallas as pl
from jax.experimental.pallas import tpu as pltpu

_BN_EPS = 1e-5


# ---------------------------------------------------------------------------
# Generation-aware VMEM budget and lane-tile selection.
# ---------------------------------------------------------------------------
def _vmem_limit_bytes():
    phys = 128 * 1024 * 1024
    try:
        info = pltpu.get_tpu_info()
        phys = int(getattr(info, "vmem_capacity_bytes", phys))
    except Exception:
        pass
    # ~half of physical, capped at 64 MiB: 64 MiB on v5e/v6e (128 MiB parts),
    # 32 MiB on v7x (64 MiB part).
    return max(16 * 1024 * 1024, min(phys // 2, 64 * 1024 * 1024))


def _pick_tile(n_pad, c, itemsize, vmem_limit):
    """Largest 128-multiple lane tile dividing n_pad that fits the budget."""
    budget = vmem_limit // 2          # headroom for scratch / resident inputs
    for t in (2048, 1024, 512, 256, 128):
        if n_pad % t:
            continue
        # dominant per-step footprint: double-buffered x tile + output tile
        # (pass 2) plus the (C, C) f32 Gram scratch (pass 1).
        foot = 4 * c * t * itemsize + c * c * 4
        if foot <= budget:
            return t
    return 128


# ---------------------------------------------------------------------------
# Pass 1 (per batch b, reduce over HW tiles t):
#   accumulate G_b = X_b X_b^T (bf16 MXU, f32 acc) and s_b = X_b @ 1;
#   at t == last: attn = softmax(G_b), W1_eff = W1 @ attn (f32), and the
#   analytic per-batch BN partial sum-of-squares  hsq_b[p] = (W1_eff G W1_eff^T)[p,p].
# ---------------------------------------------------------------------------
def _attn_fold_kernel(x_ref, w1_ref, w1eff_ref, ssum_ref, hsq_ref,
                      gram_acc):
    t = pl.program_id(1)

    @pl.when(t == 0)
    def _():
        gram_acc[...] = jnp.zeros_like(gram_acc)
        ssum_ref[...] = jnp.zeros_like(ssum_ref)

    xb = x_ref[0].astype(jnp.bfloat16)                          # (C, T) bf16
    gram_acc[...] += jnp.einsum('cn,dn->cd', xb, xb,
                                preferred_element_type=jnp.float32)
    ssum_ref[0] += jnp.sum(xb.astype(jnp.float32), axis=1, keepdims=True)

    @pl.when(t == pl.num_programs(1) - 1)
    def _():
        e = gram_acc[...]                                       # (C, C) f32
        m = jnp.max(e, axis=-1, keepdims=True)
        p = jnp.exp(e - m)
        attn = p * pl.reciprocal(jnp.sum(p, axis=-1, keepdims=True),
                                 approx=True)                   # EUP reciprocal
        w1e = jnp.dot(w1_ref[...], attn,
                      preferred_element_type=jnp.float32)       # (P, C) f32
        w1eff_ref[0] = w1e.astype(w1eff_ref.dtype)
        # Analytic BN sum-of-squares (b1 omitted: cancelled exactly by
        # training-mode BN mean subtraction).
        gw = jnp.dot(w1e, e, preferred_element_type=jnp.float32)   # (P, C)
        hsq_ref[0] = jnp.sum(gw * w1e, axis=1, keepdims=True)      # (P, 1)


# ---------------------------------------------------------------------------
# Pass 2 (streaming, fully parallel): h = W1_eff @ X, fused BN(scale,shift) +
# ReLU, gamma-folded second 1x1 conv, residual add.
# ---------------------------------------------------------------------------
def _stream_out_kernel(x_ref, w1eff_ref, scale_ref, shift_ref, w2g_ref,
                       b2g_ref, out_ref):
    xb = x_ref[0].astype(jnp.bfloat16)                            # (C, T)
    h = jnp.dot(w1eff_ref[0], xb,
                preferred_element_type=jnp.float32)               # (P, T) f32
    hn = jnp.maximum(h * scale_ref[0] + shift_ref[0], 0.0)        # BN + ReLU
    term = jnp.dot(w2g_ref[...], hn.astype(jnp.bfloat16),
                   preferred_element_type=jnp.float32)            # (C, T) f32
    out_ref[0] = (x_ref[0].astype(jnp.float32) + term
                  + b2g_ref[0]).astype(out_ref.dtype)


# ---------------------------------------------------------------------------
# Wrapper
# ---------------------------------------------------------------------------
def channel_block_forward(x_nchw, params, *, tile_hw=None):
    w1, b1, bng, bnb, w2, b2, gamma = params   # b1 unused: cancelled by BN
    B, C, H, W = x_nchw.shape
    N = H * W
    P = w1.shape[0]
    x_dtype = x_nchw.dtype

    # Zero-pad HW to a multiple of 128 lanes (exact: padded columns add 0 to
    # G and s; BN counts use the true N; padded output columns are sliced off).
    N_pad = max(128, ((N + 127) // 128) * 128)
    x = x_nchw.reshape(B, C, N)
    if N_pad != N:
        x = jnp.pad(x, ((0, 0), (0, 0), (0, N_pad - N)))

    vmem_limit = _vmem_limit_bytes()
    if tile_hw is None:
        T = _pick_tile(N_pad, C, x.dtype.itemsize, vmem_limit)
    else:
        T = tile_hw
    assert N_pad % T == 0, "tile_hw must divide the padded H*W"
    nt = N_pad // T

    w1_f32 = w1.astype(jnp.float32)

    # ---- Pass 1: Gram + row-sums -> attn -> W1_eff, analytic BN partials ---
    w1eff, ssum, hsq = pl.pallas_call(
        _attn_fold_kernel,
        out_shape=(jax.ShapeDtypeStruct((B, P, C), jnp.bfloat16),
                   jax.ShapeDtypeStruct((B, C, 1), jnp.float32),
                   jax.ShapeDtypeStruct((B, P, 1), jnp.float32)),
        grid=(B, nt),
        in_specs=[pl.BlockSpec((1, C, T), lambda b, t: (b, 0, t)),
                  pl.BlockSpec((P, C), lambda b, t: (0, 0))],
        out_specs=(pl.BlockSpec((1, P, C), lambda b, t: (b, 0, 0)),
                   pl.BlockSpec((1, C, 1), lambda b, t: (b, 0, 0)),
                   pl.BlockSpec((1, P, 1), lambda b, t: (b, 0, 0))),
        scratch_shapes=[pltpu.VMEM((C, C), jnp.float32)],
        compiler_params=pltpu.CompilerParams(
            dimension_semantics=("parallel", "arbitrary"),
            vmem_limit_bytes=vmem_limit),
    )(x, w1_f32)

    # ---- Global training-mode BN stats -> per-channel scale/shift (tiny) ---
    inv_count = 1.0 / (B * N)
    hsum_bp = jnp.einsum('bpc,bc->bp', w1eff.astype(jnp.float32),
                         ssum[:, :, 0])                        # (B, P)
    mean = jnp.sum(hsum_bp, axis=0) * inv_count                # (P,)
    ex2 = jnp.sum(hsq[:, :, 0], axis=0) * inv_count            # (P,)
    var = jnp.maximum(ex2 - mean * mean, 0.0)
    scale = bng.reshape(P).astype(jnp.float32) * jax.lax.rsqrt(var + _BN_EPS)
    shift = bnb.reshape(P).astype(jnp.float32) - mean * scale
    scale3 = scale.reshape(1, P, 1)
    shift3 = shift.reshape(1, P, 1)

    # Fold gamma into the last conv (exact in real arithmetic).
    g = gamma.reshape(()).astype(jnp.float32)
    w2g = (g * w2.astype(jnp.float32)).astype(jnp.bfloat16)    # (C, P) bf16
    b2g = (g * b2.astype(jnp.float32)).reshape(1, C, 1)        # (1, C, 1) f32

    # ---- Pass 2: out = x + conv2g(relu(BN(W1_eff @ x))) + b2g --------------
    out = pl.pallas_call(
        _stream_out_kernel,
        out_shape=jax.ShapeDtypeStruct((B, C, N_pad), x_dtype),
        grid=(B, nt),
        in_specs=[pl.BlockSpec((1, C, T), lambda b, t: (b, 0, t)),   # x tile
                  pl.BlockSpec((1, P, C), lambda b, t: (b, 0, 0)),   # W1_eff
                  pl.BlockSpec((1, P, 1), lambda b, t: (0, 0, 0)),   # BN scale
                  pl.BlockSpec((1, P, 1), lambda b, t: (0, 0, 0)),   # BN shift
                  pl.BlockSpec((C, P), lambda b, t: (0, 0)),         # gamma*W2
                  pl.BlockSpec((1, C, 1), lambda b, t: (0, 0, 0))],  # gamma*b2
        out_specs=pl.BlockSpec((1, C, T), lambda b, t: (b, 0, t)),
        compiler_params=pltpu.CompilerParams(
            dimension_semantics=("parallel", "parallel"),
            vmem_limit_bytes=vmem_limit),
    )(x, w1eff, scale3, shift3, w2g, b2g)

    return out[:, :, :N].reshape(B, C, H, W)


# ---------------------------------------------------------------------------
# Parameters
# ---------------------------------------------------------------------------
def init_params(key, inplanes, ratio=0.25):
    """Mirrors ChannelBlock.__init__/reset_parameters (zero last conv, gamma=0)."""
    planes = int(inplanes * ratio)
    k1, k2 = jax.random.split(key)
    bound = 1.0 / np.sqrt(inplanes)            # PyTorch Conv2d default (1x1)
    w1 = jax.random.uniform(k1, (planes, inplanes), jnp.float32, -bound, bound)
    b1 = jax.random.uniform(k2, (1, planes, 1), jnp.float32, -bound, bound)
    bng = jnp.ones((1, planes, 1), jnp.float32)     # BatchNorm2d weight
    bnb = jnp.zeros((1, planes, 1), jnp.float32)    # BatchNorm2d bias
    w2 = jnp.zeros((inplanes, planes), jnp.float32)   # last_zero_init
    b2 = jnp.zeros((1, inplanes, 1), jnp.float32)     # last_zero_init
    gamma = jnp.zeros((1,), jnp.float32)
    return (w1, b1, bng, bnb, w2, b2, gamma)


def random_params(key, inplanes, ratio=0.25):
    """Non-trivial ('trained-like') parameters to exercise the full path."""
    planes = int(inplanes * ratio)
    ks = jax.random.split(key, 6)
    b_in = 1.0 / np.sqrt(inplanes)
    b_pl = 1.0 / np.sqrt(planes)
    w1 = jax.random.uniform(ks[0], (planes, inplanes), jnp.float32, -b_in, b_in)
    b1 = jax.random.uniform(ks[1], (1, planes, 1), jnp.float32, -b_in, b_in)
    bng = 1.0 + 0.1 * jax.random.normal(ks[2], (1, planes, 1), jnp.float32)
    bnb = 0.1 * jax.random.normal(ks[3], (1, planes, 1), jnp.float32)
    w2 = jax.random.uniform(ks[4], (inplanes, planes), jnp.float32, -b_pl, b_pl)
    b2 = jax.random.uniform(ks[5], (1, inplanes, 1), jnp.float32, -b_pl, b_pl)
    gamma = jnp.full((1,), 0.7, jnp.float32)
    return (w1, b1, bng, bnb, w2, b2, gamma)


# ---------------------------------------------------------------------------
# Plain-JAX reference (PyTorch forward semantics, PyTorch op ordering).
# matmul_dtype=bf16 mirrors the kernel's MXU dtype policy (f32 accumulation).
# ---------------------------------------------------------------------------
def reference_forward(x_nchw, params, *, matmul_dtype=jnp.float32):
    w1, b1, bng, bnb, w2, b2, gamma = params
    B, C, H, W = x_nchw.shape
    N = H * W
    x = x_nchw.reshape(B, C, N).astype(jnp.float32)
    mm = matmul_dtype

    xb = x.astype(mm)
    energy = jnp.einsum('bcn,bdn->bcd', xb, xb, preferred_element_type=jnp.float32)
    attn = jax.nn.softmax(energy, axis=-1)
    context = jnp.einsum('bcd,bdn->bcn', attn.astype(mm), xb,
                         preferred_element_type=jnp.float32)
    h = jnp.einsum('pc,bcn->bpn', w1.astype(mm), context.astype(mm),
                   preferred_element_type=jnp.float32) + b1
    mean = jnp.mean(h, axis=(0, 2), keepdims=True)
    var = jnp.mean(jnp.square(h - mean), axis=(0, 2), keepdims=True)
    hn = jnp.maximum((h - mean) * jax.lax.rsqrt(var + _BN_EPS) * bng + bnb, 0.0)
    term = jnp.einsum('cp,bpn->bcn', w2.astype(mm), hn.astype(mm),
                      preferred_element_type=jnp.float32) + b2
    out = x + gamma[0] * term
    return out.reshape(B, C, H, W)


if __name__ == "__main__":
    key = jax.random.PRNGKey(0)
    kx1, kx2, kp1, kp2, kp3 = jax.random.split(key, 5)

    # ---- Config 1: inplanes=8, ratio=0.25 -> planes=2; H*W=256 -------------
    B, C, H, W = 2, 8, 16, 16
    x = 0.15 * jax.random.normal(kx1, (B, C, H, W), jnp.float32)

    # (a) init params: zero last conv + gamma=0  =>  exact identity block.
    p0 = init_params(kp1, C, ratio=0.25)
    out0 = jax.block_until_ready(channel_block_forward(x, p0, tile_hw=128))
    np.testing.assert_allclose(np.asarray(out0), np.asarray(x),
                               rtol=1e-6, atol=1e-6)

    # (b) non-trivial params, multi-tile reduction path (tile_hw=128).
    #     Tight check vs a bf16-matmul reference (same MXU dtype policy);
    #     loose check vs pure-f32 PyTorch math (bf16-MXU rounding only).
    p1 = random_params(kp2, C, ratio=0.25)
    out1 = jax.block_until_ready(channel_block_forward(x, p1, tile_hw=128))
    ref1_bf = reference_forward(x, p1, matmul_dtype=jnp.bfloat16)
    np.testing.assert_allclose(np.asarray(out1), np.asarray(ref1_bf),
                               rtol=2.5e-2, atol=2.5e-2)
    ref1_f32 = reference_forward(x, p1)
    np.testing.assert_allclose(np.asarray(out1), np.asarray(ref1_f32),
                               rtol=6e-2, atol=6e-2)

    # (c) native bf16 input (halved x read traffic), auto tile selection.
    x_bf = x.astype(jnp.bfloat16)
    out1b = jax.block_until_ready(channel_block_forward(x_bf, p1))
    ref1b = reference_forward(x_bf, p1, matmul_dtype=jnp.bfloat16)
    np.testing.assert_allclose(np.asarray(out1b.astype(jnp.float32)),
                               np.asarray(ref1b), rtol=3e-2, atol=3e-2)

    # ---- Config 2: inplanes=16, ratio=0.5 -> planes=8; H*W=64 (padded->128) -
    B2, C2, H2, W2 = 2, 16, 8, 8
    x2 = 0.1 * jax.random.normal(kx2, (B2, C2, H2, W2), jnp.float32)

    # (a) identity through the padded path.
    p2_id = init_params(kp1, C2, ratio=0.5)
    out2_id = jax.block_until_ready(channel_block_forward(x2, p2_id))
    np.testing.assert_allclose(np.asarray(out2_id), np.asarray(x2),
                               rtol=1e-6, atol=1e-6)

    # (b) non-trivial params through the padded path.
    p2 = random_params(kp3, C2, ratio=0.5)
    out2 = jax.block_until_ready(channel_block_forward(x2, p2))
    ref2_bf = reference_forward(x2, p2, matmul_dtype=jnp.bfloat16)
    np.testing.assert_allclose(np.asarray(out2), np.asarray(ref2_bf),
                               rtol=2.5e-2, atol=2.5e-2)
    ref2_f32 = reference_forward(x2, p2)
    np.testing.assert_allclose(np.asarray(out2), np.asarray(ref2_f32),
                               rtol=6e-2, atol=6e-2)

    print("KERNEL_OK")
</pallas_src>

<mosaic_0001>
module attributes {stable_mosaic.version = 11 : i64} {
  func.func @_attn_fold_kernel(%arg0: i32, %arg1: i32, %arg2: memref<1x8x128xf32, #tpu.memory_space<vmem>>, %arg3: memref<2x8xf32, #tpu.memory_space<vmem>>, %arg4: memref<1x2x8xbf16, #tpu.memory_space<vmem>>, %arg5: memref<1x8x1xf32, #tpu.memory_space<vmem>>, %arg6: memref<1x2x1xf32, #tpu.memory_space<vmem>>, %arg7: memref<8x8xf32, #tpu.memory_space<vmem>>) attributes {dimension_semantics = [#tpu.dimension_semantics<parallel>, #tpu.dimension_semantics<arbitrary>], iteration_bounds = array<i64: 2, 2>, scalar_prefetch = 0 : i64, scratch_operands = 1 : i64, tpu.core_type = #tpu.core_type<tc>, window_params = [{transform_indices = @transform_0, window_bounds = array<i64: 1, 8, 128>}, {pipeline_mode = #tpu.pipeline_mode<synchronous>, transform_indices = @transform_1, window_bounds = array<i64: 2, 8>}, {transform_indices = @transform_2, window_bounds = array<i64: 1, 2, 8>}, {transform_indices = @transform_3, window_bounds = array<i64: 1, 8, 1>}, {transform_indices = @transform_4, window_bounds = array<i64: 1, 2, 1>}]} {
    %c0_i32 = arith.constant 0 : i32
    %0 = arith.cmpi eq, %arg1, %c0_i32 : i32
    %1 = arith.extui %0 : i1 to i32
    %c0_i32_0 = arith.constant 0 : i32
    %2 = arith.cmpi ne, %1, %c0_i32_0 : i32
    scf.if %2 {
      %cst_15 = arith.constant 0.000000e+00 : f32
      %22 = vector.broadcast %cst_15 : f32 to vector<8x8xf32>
      %c0_16 = arith.constant 0 : index
      %c0_17 = arith.constant 0 : index
      %23 = vector.load %arg7[%c0_16, %c0_17] : memref<8x8xf32, #tpu.memory_space<vmem>>, vector<8x8xf32>
      tpu.vector_store %arg7[%c0_16, %c0_17], %22 {strides = array<i32>} : memref<8x8xf32, #tpu.memory_space<vmem>>, vector<8x8xf32>,
      %cst_18 = arith.constant 0.000000e+00 : f32
      %24 = vector.broadcast %cst_18 : f32 to vector<1x8x1xf32>
      %c0_19 = arith.constant 0 : index
      %c0_20 = arith.constant 0 : index
      %c0_21 = arith.constant 0 : index
      %25 = vector.load %arg5[%c0_19, %c0_20, %c0_21] : memref<1x8x1xf32, #tpu.memory_space<vmem>>, vector<1x8x1xf32>
      tpu.vector_store %arg5[%c0_19, %c0_20, %c0_21], %24 {strides = array<i32>} : memref<1x8x1xf32, #tpu.memory_space<vmem>>, vector<1x8x1xf32>,
    } else {
    }
    %c0 = arith.constant 0 : index
    %c0_1 = arith.constant 0 : index
    %c0_2 = arith.constant 0 : index
    %3 = vector.load %arg2[%c0, %c0_1, %c0_2] : memref<1x8x128xf32, #tpu.memory_space<vmem>>, vector<1x8x128xf32>
    %4 = vector.shape_cast %3 : vector<1x8x128xf32> to vector<8x128xf32>
    %5 = arith.truncf %4 : vector<8x128xf32> to vector<8x128xbf16>
    %c0_3 = arith.constant 0 : index
    %c0_4 = arith.constant 0 : index
    %6 = vector.load %arg7[%c0_3, %c0_4] : memref<8x8xf32, #tpu.memory_space<vmem>>, vector<8x8xf32>
    "tpu.trace_start"() <{level = 10 : i32, message = "cn,dn->cd"}> : () -> ()
    %cst = arith.constant dense<0.000000e+00> : vector<8x8xf32>
    %7 = tpu.matmul %5, %5, %cst {dimension_numbers = #tpu.dot_dimension_numbers<[1], [1], [0], [0], [0, 0, 1, 0], [], []>} : vector<8x128xbf16>, vector<8x128xbf16>, vector<8x8xf32> -> vector<8x8xf32>
    "tpu.trace_stop"() : () -> ()
    %8 = arith.addf %6, %7 : vector<8x8xf32>
    %c0_5 = arith.constant 0 : index
    %c0_6 = arith.constant 0 : index
    %9 = vector.load %arg7[%c0_5, %c0_6] : memref<8x8xf32, #tpu.memory_space<vmem>>, vector<8x8xf32>
    tpu.vector_store %arg7[%c0_5, %c0_6], %8 {strides = array<i32>} : memref<8x8xf32, #tpu.memory_space<vmem>>, vector<8x8xf32>,
    %c0_7 = arith.constant 0 : index
    %c0_8 = arith.constant 0 : index
    %c0_9 = arith.constant 0 : index
    %10 = vector.load %arg5[%c0_7, %c0_8, %c0_9] : memref<1x8x1xf32, #tpu.memory_space<vmem>>, vector<1x8x1xf32>
    %11 = vector.shape_cast %10 : vector<1x8x1xf32> to vector<8x1xf32>
    %12 = arith.extf %5 : vector<8x128xbf16> to vector<8x128xf32>
    %cst_10 = arith.constant dense<0.000000e+00> : vector<8xf32>
    %13 = vector.multi_reduction <add>, %12, %cst_10 [1] : vector<8x128xf32> to vector<8xf32>
    %14 = vector.shape_cast %13 : vector<8xf32> to vector<8x1xf32>
    %15 = arith.addf %11, %14 : vector<8x1xf32>
    %c0_11 = arith.constant 0 : index
    %c0_12 = arith.constant 0 : index
    %c0_13 = arith.constant 0 : index
    %16 = vector.load %arg5[%c0_11, %c0_12, %c0_13] : memref<1x8x1xf32, #tpu.memory_space<vmem>>, vector<1x8x1xf32>
    %17 = vector.shape_cast %16 : vector<1x8x1xf32> to vector<8x1xf32>
    %18 = vector.shape_cast %15 : vector<8x1xf32> to vector<1x8x1xf32>
    tpu.vector_store %arg5[%c0_11, %c0_12, %c0_13], %18 {strides = array<i32>} : memref<1x8x1xf32, #tpu.memory_space<vmem>>, vector<1x8x1xf32>,
    %c1_i32 = arith.constant 1 : i32
    %19 = arith.cmpi eq, %arg1, %c1_i32 : i32
    %20 = arith.extui %19 : i1 to i32
    %c0_i32_14 = arith.constant 0 : i32
    %21 = arith.cmpi ne, %20, %c0_i32_14 : i32
    scf.if %21 {
      %c0_15 = arith.constant 0 : index
      %c0_16 = arith.constant 0 : index
      %22 = vector.load %arg7[%c0_15, %c0_16] : memref<8x8xf32, #tpu.memory_space<vmem>>, vector<8x8xf32>
      %cst_17 = arith.constant dense<0xFF800000> : vector<8xf32>
      %23 = vector.multi_reduction <maximumf>, %22, %cst_17 [1] : vector<8x8xf32> to vector<8xf32>
      %24 = vector.shape_cast %23 : vector<8xf32> to vector<8x1xf32>
      %25 = vector.broadcast %24 : vector<8x1xf32> to vector<8x8xf32>
      %26 = arith.subf %22, %25 : vector<8x8xf32>
      %27 = math.exp %26 : vector<8x8xf32>
      %cst_18 = arith.constant dense<0.000000e+00> : vector<8xf32>
      %28 = vector.multi_reduction <add>, %27, %cst_18 [1] : vector<8x8xf32> to vector<8xf32>
      %29 = vector.shape_cast %28 : vector<8xf32> to vector<8x1xf32>
      %30 = tpu.reciprocal %29 {approx = true} : vector<8x1xf32> -> vector<8x1xf32>
      %31 = vector.broadcast %30 : vector<8x1xf32> to vector<8x8xf32>
      %32 = arith.mulf %27, %31 : vector<8x8xf32>
      %c0_19 = arith.constant 0 : index
      %c0_20 = arith.constant 0 : index
      %33 = vector.load %arg3[%c0_19, %c0_20] : memref<2x8xf32, #tpu.memory_space<vmem>>, vector<2x8xf32>
      %cst_21 = arith.constant dense<0.000000e+00> : vector<2x8xf32>
      %34 = tpu.matmul %33, %32, %cst_21 {dimension_numbers = #tpu.dot_dimension_numbers<[1], [0], [0], [1], [0, 0, 1, 1], [], []>} : vector<2x8xf32>, vector<8x8xf32>, vector<2x8xf32> -> vector<2x8xf32>
      %35 = arith.truncf %34 : vector<2x8xf32> to vector<2x8xbf16>
      %c0_22 = arith.constant 0 : index
      %c0_23 = arith.constant 0 : index
      %c0_24 = arith.constant 0 : index
      %36 = vector.load %arg4[%c0_22, %c0_23, %c0_24] : memref<1x2x8xbf16, #tpu.memory_space<vmem>>, vector<1x2x8xbf16>
      %37 = vector.shape_cast %36 : vector<1x2x8xbf16> to vector<2x8xbf16>
      %38 = vector.shape_cast %35 : vector<2x8xbf16> to vector<1x2x8xbf16>
      tpu.vector_store %arg4[%c0_22, %c0_23, %c0_24], %38 {strides = array<i32>} : memref<1x2x8xbf16, #tpu.memory_space<vmem>>, vector<1x2x8xbf16>,
      %cst_25 = arith.constant dense<0.000000e+00> : vector<2x8xf32>
      %39 = tpu.matmul %34, %22, %cst_25 {dimension_numbers = #tpu.dot_dimension_numbers<[1], [0], [0], [1], [0, 0, 1, 1], [], []>} : vector<2x8xf32>, vector<8x8xf32>, vector<2x8xf32> -> vector<2x8xf32>
      %40 = arith.mulf %39, %34 : vector<2x8xf32>
      %cst_26 = arith.constant dense<0.000000e+00> : vector<2xf32>
      %41 = vector.multi_reduction <add>, %40, %cst_26 [1] : vector<2x8xf32> to vector<2xf32>
      %42 = vector.shape_cast %41 : vector<2xf32> to vector<2x1xf32>
      %c0_27 = arith.constant 0 : index
      %c0_28 = arith.constant 0 : index
      %c0_29 = arith.constant 0 : index
      %43 = vector.load %arg6[%c0_27, %c0_28, %c0_29] : memref<1x2x1xf32, #tpu.memory_space<vmem>>, vector<1x2x1xf32>
      %44 = vector.shape_cast %43 : vector<1x2x1xf32> to vector<2x1xf32>
      %45 = vector.shape_cast %42 : vector<2x1xf32> to vector<1x2x1xf32>
      tpu.vector_store %arg6[%c0_27, %c0_28, %c0_29], %45 {strides = array<i32>} : memref<1x2x1xf32, #tpu.memory_space<vmem>>, vector<1x2x1xf32>,
    } else {
    }
    return
  }
  func.func @transform_0(%arg0: i32, %arg1: i32) -> (i32, i32, i32) {
    %c0_i32 = arith.constant 0 : i32
    %c0_i32_0 = arith.constant 0 : i32
    return %arg0, %c0_i32, %arg1 : i32, i32, i32
  }
  func.func @transform_1(%arg0: i32, %arg1: i32) -> (i32, i32) {
    %c0_i32 = arith.constant 0 : i32
    %c0_i32_0 = arith.constant 0 : i32
    %c0_i32_1 = arith.constant 0 : i32
    return %c0_i32, %c0_i32_0 : i32, i32
  }
  func.func @transform_2(%arg0: i32, %arg1: i32) -> (i32, i32, i32) {
    %c0_i32 = arith.constant 0 : i32
    %c0_i32_0 = arith.constant 0 : i32
    %c0_i32_1 = arith.constant 0 : i32
    return %arg0, %c0_i32, %c0_i32_0 : i32, i32, i32
  }
  func.func @transform_3(%arg0: i32, %arg1: i32) -> (i32, i32, i32) {
    %c0_i32 = arith.constant 0 : i32
    %c0_i32_0 = arith.constant 0 : i32
    %c0_i32_1 = arith.constant 0 : i32
    return %arg0, %c0_i32, %c0_i32_0 : i32, i32, i32
  }
  func.func @transform_4(%arg0: i32, %arg1: i32) -> (i32, i32, i32) {
    %c0_i32 = arith.constant 0 : i32
    %c0_i32_0 = arith.constant 0 : i32
    %c0_i32_1 = arith.constant 0 : i32
    return %arg0, %c0_i32, %c0_i32_0 : i32, i32, i32
  }
}

</mosaic_0001>

<llo_original>
// kernel: tpu_custom_call.1
$region0: #{tpu_custom_call.1}
  #allocation0 [shape = 'u32[]', space=smem, size = 0x4, offset = 0x4, fixed_abs, tag = 'smem constant byte address 0x4 - core index']
  #allocation1 [shape = 'u32[144,128]{1,0:T(1,128)}', space=vmem, size = 0x12000, scoped, tag = 'internal scratch']
  #allocation2 [shape = 'f32[8,8]{1,0:T(8,128)}', space=vmem, size = 0x1000, scoped, tag = 'scratch operand']
  %s0 = inlined_call_operand.hbm [shape: f32[2,8,256], index: 0, kind: input, shape index: {}]
  %s1 = inlined_call_operand.hbm [shape: f32[2,8], index: 1, kind: input, shape index: {}]
  %s2 = inlined_call_operand.hbm [shape: bf16[2,2,8], index: 2, kind: output, shape index: {0}]
  %s3 = inlined_call_operand.vmem [shape: f32[2,8,1], index: 3, kind: output, shape index: {1}]
  %s4 = inlined_call_operand.vmem [shape: f32[2,2,1], index: 4, kind: output, shape index: {2}]
  %5 = xla_tuple %s2, %s3, %s4
  %s6 = sld [smem:[#allocation0]]
  $region73: #{tpu_custom_call.1} parent=0
    _
  %s8 = ssub.s32 1, %s6
  %s9 = scalar_select 0, %s8, %s6
  $region1: #{tpu_custom_call.1} parent=0
    #allocation3 [shape = 'u8[8192]{0}', space=vmem, size = 0x2000, scoped, tag = 'input window, operand 0']
    #allocation4 [shape = 's32[2]{0}', space=sflag, size = 0x8, scoped, tag = 'scoped memory for tpu_custom_call.1']
    #allocation5 [shape = 's32[2]{0}', space=sflag, size = 0x8, scoped, tag = 'scoped memory for tpu_custom_call.1']
    #allocation6 [shape = 'u8[1024]{0}', space=vmem, size = 0x400, scoped, tag = 'input window, operand 1, single buffered']
    #allocation7 [shape = 's32[1]{0}', space=sflag, size = 0x4, scoped, tag = 'scoped memory for tpu_custom_call.1']
    #allocation8 [shape = 'u8[1024]{0}', space=vmem, size = 0x400, scoped, tag = 'output window, operand 0']
    %10 = vsyncpa [#allocation4], 0
    %s11 = scalar_lea.sflag [#allocation4], 1
    %12 = vsyncpa %s11, 0
    %13 = vsyncpa [#allocation7], 0
    %14 = vsyncpa [#allocation5], 0
    %s15 = scalar_lea.sflag [#allocation5], 1
    %16 = vsyncpa %s15, 0
    loop: start=0, step=1, limit=6
    $region2: #{tpu_custom_call.1} parent=1 // loop_pre_header
      _
    $region3: #{tpu_custom_call.1} parent=1 // loop_header
      %s18 = sphi 0, %s22
      %p19 = scmp.ge.s32.totalorder %s18, 6
      %s25 = sphi 0, %s37
      %s26 = sphi 0, %s33
      %s27 = sphi 0, %s25
      %s28 = sphi 0, %s26
      %s29 = sphi 0, %s27
      %s30 = sphi 0, %s28
      %s42 = sphi 0, %s44
      %s45 = sphi 0, %s42
      %s46 = sphi 0, %s45
      %s62 = sphi 0, %s46
      %s66 = sphi 0, %s66
      %s68 = sphi 0, %s66
      %s69 = sphi 0, %s68
      %s83 = sphi 0, %s69
      %s89 = sphi 0, %s91
      %s92 = sphi 0, %s89
      %s93 = sphi 0, %s92
      %s109 = sphi 0, %s93
      %s115 = sphi 0, %s117
      %s118 = sphi 0, %s115
      %s119 = sphi 0, %s118
      %s135 = sphi 0, %s119
      %s141 = sphi 0, %s143
      %s144 = sphi 0, %s141
      %s145 = sphi 0, %s144
      %s161 = sphi 0, %s145
    $region4: #{tpu_custom_call.1} parent=1 // loop_header_branch
      %21 = sbr.rel (%p19) target = $region8
    $region5: #{tpu_custom_call.1} parent=1 // loop_body
      %s23 = ssub.s32 %s18, 1
      %s24 = ssub.s32 %s18, 2
      %s31 = sadd.s32 1, %s26
      %p32 = scmp.ge.s32.totalorder %s31, 2
      %s33 = scalar_select %p32, 0, %s31
      %s34 = sadd.s32 1, %s25
      %s35 = scalar_select %p32, %s34, %s25
      %p36 = scmp.ge.s32.totalorder %s35, 2
      %s37 = scalar_select %p36, 0, %s35
      %s38 = ssub.s32 %s25, %s37
      %s39 = ssub.s32 %s26, %s33
      %s40 = sor.u32 %s38, %s39
      %p41 = scmp.eq.s32.totalorder %s40, 0
      %s43 = sadd.s32 %s42, 1
      %s44 = scalar_select %p41, %s42, %s43
      %p47 = pneg %p41
      %p48 = scmp.eq.s32.totalorder %s18, 3
      %p49 = por %p47, %p48
      %p50 = scmp.ne.s32.totalorder %s42, %s45
      %p51 = scmp.eq.s32.totalorder %s18, 0
      %p52 = por %p50, %p51
      %p53 = scmp.ne.s32.totalorder %s42, %s45
      %p54 = scmp.eq.s32.totalorder %s23, 3
      %p55 = por %p53, %p54
      %p56 = scmp.ne.s32.totalorder %s45, %s46
      %p57 = scmp.eq.s32.totalorder %s23, 0
      %p58 = por %p56, %p57
      %p59 = scmp.ne.s32.totalorder %s45, %s46
      %p60 = scmp.eq.s32.totalorder %s24, 3
      %p61 = por %p59, %p60
      %p63 = scmp.ne.s32.totalorder %s46, %s62
      %p64 = scmp.eq.s32.totalorder %s24, 0
      %p65 = por %p63, %p64
      %s67 = sadd.s32 %s66, 1
      %p70 = scmp.eq.s32.totalorder %s18, 3
      %p71 = scmp.ne.s32.totalorder %s66, %s68
      %p72 = scmp.eq.s32.totalorder %s18, 0
      %p73 = por %p71, %p72
      %p74 = scmp.ne.s32.totalorder %s66, %s68
      %p75 = scmp.eq.s32.totalorder %s23, 3
      %p76 = por %p74, %p75
      %p77 = scmp.ne.s32.totalorder %s68, %s69
      %p78 = scmp.eq.s32.totalorder %s23, 0
      %p79 = por %p77, %p78
      %p80 = scmp.ne.s32.totalorder %s68, %s69
      %p81 = scmp.eq.s32.totalorder %s24, 3
      %p82 = por %p80, %p81
      %p84 = scmp.ne.s32.totalorder %s69, %s83
      %p85 = scmp.eq.s32.totalorder %s24, 0
      %p86 = por %p84, %p85
      %s87 = ssub.s32 %s25, %s37
      %p88 = scmp.eq.s32.totalorder %s87, 0
      %s90 = sadd.s32 %s89, 1
      %s91 = scalar_select %p88, %s89, %s90
      %p94 = pneg %p88
      %p95 = scmp.eq.s32.totalorder %s18, 3
      %p96 = por %p94, %p95
      %p97 = scmp.ne.s32.totalorder %s89, %s92
      %p98 = scmp.eq.s32.totalorder %s18, 0
      %p99 = por %p97, %p98
      %p100 = scmp.ne.s32.totalorder %s89, %s92
      %p101 = scmp.eq.s32.totalorder %s23, 3
      %p102 = por %p100, %p101
      %p103 = scmp.ne.s32.totalorder %s92, %s93
      %p104 = scmp.eq.s32.totalorder %s23, 0
      %p105 = por %p103, %p104
      %p106 = scmp.ne.s32.totalorder %s92, %s93
      %p107 = scmp.eq.s32.totalorder %s24, 3
      %p108 = por %p106, %p107
      %p110 = scmp.ne.s32.totalorder %s93, %s109
      %p111 = scmp.eq.s32.totalorder %s24, 0
      %p112 = por %p110, %p111
      %s113 = ssub.s32 %s25, %s37
      %p114 = scmp.eq.s32.totalorder %s113, 0
      %s116 = sadd.s32 %s115, 1
      %s117 = scalar_select %p114, %s115, %s116
      %p120 = pneg %p114
      %p121 = scmp.eq.s32.totalorder %s18, 3
      %p122 = por %p120, %p121
      %p123 = scmp.ne.s32.totalorder %s115, %s118
      %p124 = scmp.eq.s32.totalorder %s18, 0
      %p125 = por %p123, %p124
      %p126 = scmp.ne.s32.totalorder %s115, %s118
      %p127 = scmp.eq.s32.totalorder %s23, 3
      %p128 = por %p126, %p127
      %p129 = scmp.ne.s32.totalorder %s118, %s119
      %p130 = scmp.eq.s32.totalorder %s23, 0
      %p131 = por %p129, %p130
      %p132 = scmp.ne.s32.totalorder %s118, %s119
      %p133 = scmp.eq.s32.totalorder %s24, 3
      %p134 = por %p132, %p133
      %p136 = scmp.ne.s32.totalorder %s119, %s135
      %p137 = scmp.eq.s32.totalorder %s24, 0
      %p138 = por %p136, %p137
      %s139 = ssub.s32 %s25, %s37
      %p140 = scmp.eq.s32.totalorder %s139, 0
      %s142 = sadd.s32 %s141, 1
      %s143 = scalar_select %p140, %s141, %s142
      %p146 = pneg %p140
      %p147 = scmp.eq.s32.totalorder %s18, 3
      %p148 = por %p146, %p147
      %p149 = scmp.ne.s32.totalorder %s141, %s144
      %p150 = scmp.eq.s32.totalorder %s18, 0
      %p151 = por %p149, %p150
      %p152 = scmp.ne.s32.totalorder %s141, %s144
      %p153 = scmp.eq.s32.totalorder %s23, 3
      %p154 = por %p152, %p153
      %p155 = scmp.ne.s32.totalorder %s144, %s145
      %p156 = scmp.eq.s32.totalorder %s23, 0
      %p157 = por %p155, %p156
      %p158 = scmp.ne.s32.totalorder %s144, %s145
      %p159 = scmp.eq.s32.totalorder %s24, 3
      %p160 = por %p158, %p159
      %p162 = scmp.ne.s32.totalorder %s145, %s161
      %p163 = scmp.eq.s32.totalorder %s24, 0
      %p164 = por %p162, %p163
      %p165 = scmp.le.s32.totalorder 1, %s18
      %p166 = scmp.lt.s32.totalorder %s18, 5
      %p167 = pnand %p165, %p166
      %p168 = pneg %p167
      // Predicated region
      $region9: #{tpu_custom_call.1} parent=5 // pred_check
        _
      $region10: #{tpu_custom_call.1} parent=5 // pred_check_branch
        %170 = sbr.rel (%p167) target = $region12
      $region11: #{tpu_custom_call.1} parent=5 // pred_region
        %s171 = ssub.s32 %s18, 1
        // Predicated region
        $region13: #{tpu_custom_call.1} parent=11 // pred_check
          %p172 = pneg %p79
        $region14: #{tpu_custom_call.1} parent=11 // pred_check_branch
          %174 = sbr.rel (%p172) target = $region16
        $region15: #{tpu_custom_call.1} parent=11 // pred_region
          %s176 = ssub.s32 32, 32
          %177 = vsyncadd [#allocation7], %s176
          %s179 = sshll.u32 [#allocation6], 4
          %s180 = int_to_ptr.vmem [resolvable:$true] %s179
          %182 = dma.hbm_to_vmem [thread:$0]  %s1, 32, %s180, [#allocation7]
        $region16: #{tpu_custom_call.1} parent=11 // pred_fallthru
          _
      $region12: #{tpu_custom_call.1} parent=5 // pred_fallthru
        _
      %p183 = scmp.lt.s32.totalorder %s18, 4
      // Predicated region
      $region17: #{tpu_custom_call.1} parent=5 // pred_check
        %p184 = pneg %p183
      $region18: #{tpu_custom_call.1} parent=5 // pred_check_branch
        %186 = sbr.rel (%p184) target = $region20
      $region19: #{tpu_custom_call.1} parent=5 // pred_region
        // Predicated region
        $region21: #{tpu_custom_call.1} parent=19 // pred_check
          %p187 = pneg %p52
        $region22: #{tpu_custom_call.1} parent=19 // pred_check_branch
          %189 = sbr.rel (%p187) target = $region24
        $region23: #{tpu_custom_call.1} parent=19 // pred_region
          %s190 = sand.u32 %s42, 1
          %s191 = scalar_lea.sflag [#allocation4], %s190
          %s192 = sand.u32 %s42, 1
          %s193 = smul.addr %s192, 8
          %s194 = scalar_lea.vmem [#allocation3], %s193
          %s196 = ssub.s32 128, 128
          %197 = vsyncadd %s191, %s196
          %s198 = smul.addr %s25, 2
          %s199 = sadd.s32 %s26, %s198
          %s200 = smul.addr %s199, 128
          %s201 = scalar_lea.hbm %s0, %s200
          %s203 = sshll.u32 %s194, 4
          %s204 = int_to_ptr.vmem [resolvable:$true] %s203
          %206 = dma.hbm_to_vmem [thread:$0]  %s201, 128, %s204, %s191
        $region24: #{tpu_custom_call.1} parent=19 // pred_fallthru
          _
      $region20: #{tpu_custom_call.1} parent=5 // pred_fallthru
        _
      %p207 = scmp.le.s32.totalorder 1, %s18
      %p208 = scmp.lt.s32.totalorder %s18, 5
      %p209 = pnand %p207, %p208
      %p210 = pneg %p209
      // Predicated region
      $region25: #{tpu_custom_call.1} parent=5 // pred_check
        _
      $region26: #{tpu_custom_call.1} parent=5 // pred_check_branch
        %212 = sbr.rel (%p209) target = $region28
      $region27: #{tpu_custom_call.1} parent=5 // pred_region
        %s213 = ssub.s32 %s18, 1
        %s214 = sand.u32 %s45, 1
        %s215 = scalar_lea.sflag [#allocation4], %s214
        %s216 = sand.u32 %s45, 1
        %s217 = smul.addr %s216, 8
        %s218 = scalar_lea.vmem [#allocation3], %s217
        // Predicated region
        $region29: #{tpu_custom_call.1} parent=27 // pred_check
          %p219 = pneg %p58
        $region30: #{tpu_custom_call.1} parent=27 // pred_check_branch
          %221 = sbr.rel (%p219) target = $region32
        $region31: #{tpu_custom_call.1} parent=27 // pred_region
          %222 = dma.done %s215, 128
        $region32: #{tpu_custom_call.1} parent=27 // pred_fallthru
          _
        // Predicated region
        $region33: #{tpu_custom_call.1} parent=27 // pred_check
          %p223 = pneg %p79
        $region34: #{tpu_custom_call.1} parent=27 // pred_check_branch
          %225 = sbr.rel (%p223) target = $region36
        $region35: #{tpu_custom_call.1} parent=27 // pred_region
          %226 = dma.done [#allocation7], 32
        $region36: #{tpu_custom_call.1} parent=27 // pred_fallthru
          _
        %s227 = sand.u32 %s45, 1
        %s228 = scalar_lea.sflag [#allocation4], %s227
        %s229 = sand.u32 %s45, 1
        %s230 = smul.addr %s229, 8
        %s231 = scalar_lea.vmem [#allocation3], %s230
        %p232 = pneg %p58
        %p233 = pneg %p55
        %p234 = pneg %p79
        %p235 = pneg %p76
        %p236 = pneg %p105
        %p237 = pneg %p102
        %s238 = sand.u32 %s92, 1
        %s239 = scalar_lea.sflag [#allocation5], %s238
        %s240 = sand.u32 %s92, 1
        %s241 = scalar_lea.vmem [#allocation8], %s240
        %p242 = pneg %p131
        %p243 = pneg %p128
        %p244 = scmp.lt.s32.totalorder %s27, 1
        %s245 = scalar_select %p244, %s27, 1
        %s246 = smul.addr %s245, 8
        %s247 = scalar_lea.vmem %s3, %s246
        %p248 = pneg %p157
        %p249 = pneg %p154
        %p250 = scmp.lt.s32.totalorder %s27, 1
        %s251 = scalar_select %p250, %s27, 1
        %s252 = smul.addr %s251, 2
        %s253 = scalar_lea.vmem %s4, %s252
        %p254 = scmp.lt.s32.totalorder %s27, 1
        %s255 = scalar_select %p254, %s27, 1
        %s256 = smul.addr %s255, 8
        %s257 = scalar_lea.vmem %s3, %s256
        %p258 = scmp.lt.s32.totalorder %s27, 1
        %s259 = scalar_select %p258, %s27, 1
        %s260 = smul.addr %s259, 2
        %s261 = scalar_lea.vmem %s4, %s260
        %p263 = scmp.eq.s32.totalorder %s28, 0
        // Predicated region
        $region37: #{tpu_custom_call.1} parent=27 // pred_check
          %p264 = pneg %p263
        $region38: #{tpu_custom_call.1} parent=27 // pred_check_branch
          %266 = sbr.rel (%p264) target = $region40
        $region39: #{tpu_custom_call.1} parent=27 // pred_region
          %vm267 = vcmask 64512
          %268 = vst.msk [vmem:[#allocation2] sm:$0xff] %vm267, 0.0
          %vm269 = vcmask 7168
          %270 = vst.msk [vmem:[%s257] sm:$0xff] %vm269, 0.0
        $region40: #{tpu_custom_call.1} parent=27 // pred_fallthru
          _
        %v271 = vld [vmem:[%s218] sm:$0xff]
        %v272 = vpack.c.bf16 %v271, %v271
        %v273 = vld [vmem:[#allocation2] sm:$0xff]
        %274 = vmatprep.subr.bf16.mxu0 0
        %275 = vmatpush1.bf16.xpose.msra.mxu0 0
        %276 = vmatprep.subr.bf16.mxu0 0
        %277 = vmatpush1.bf16.xpose.msra.mxu0 0
        %278 = vmatprep.subr.bf16.mxu0 0
        %279 = vmatpush1.bf16.xpose.msra.mxu0 0
        %280 = vmatprep.subr.bf16.mxu0 0
        %281 = vmatpush1.bf16.xpose.msra.mxu0 0
        %282 = vmatprep.subr.bf16.mxu0 0
        %283 = vmatpush1.bf16.xpose.msra.mxu0 0
        %284 = vmatprep.subr.bf16.mxu0 0
        %285 = vmatpush1.bf16.xpose.msra.mxu0 0
        %286 = vmatprep.subr.bf16.mxu0 0
        %287 = vmatpush1.bf16.xpose.msra.mxu0 0
        %288 = vmatprep.subr.bf16.mxu0 0
        %289 = vmatpush1.bf16.xpose.msra.mxu0 %v272
        %290 = vmatprep.subr.bf16.mxu0 0
        %291 = vmatpush2.bf16.xpose.msra.mxu0 0
        %292 = vmatprep.subr.bf16.mxu0 0
        %293 = vmatpush2.bf16.xpose.msra.mxu0 0
        %294 = vmatprep.subr.bf16.mxu0 0
        %295 = vmatpush2.bf16.xpose.msra.mxu0 0
        %296 = vmatprep.subr.bf16.mxu0 0
        %297 = vmatpush2.bf16.xpose.msra.mxu0 0
        %298 = vmatprep.subr.bf16.mxu0 0
        %299 = vmatpush2.bf16.xpose.msra.mxu0 0
        %300 = vmatprep.subr.bf16.mxu0 0
        %301 = vmatpush2.bf16.xpose.msra.mxu0 0
        %302 = vmatprep.subr.bf16.mxu0 0
        %303 = vmatpush2.bf16.xpose.msra.mxu0 0
        %304 = vmatprep.subr.bf16.mxu0 0
        %305 = vmatpush2.bf16.xpose.msra.mxu0 0
        %306 = vmatprep.mubr.bf16.mxu0 0
        %307 = vmatmul.mubr.bf16.gmra.mxu0 %v272
        %v308 = vpop.f32.mrf.mxu0
        %v309 = vadd.f32 0.0, %v308
        %v310 = vpop.f32.mrf.mxu0
        %v311 = vpop.f32.mrf.mxu0
        %v312 = vpop.f32.mrf.mxu0
        %313 = vdwg.mxu0
        %v314 = vadd.f32 %v273, %v309
        %vm315 = vcmask 64512
        %316 = vst.msk [vmem:[#allocation2] sm:$0xff] %vm315, %v314
        %v317 = vld [vmem:[%s257] sm:$0xff]
        %v318 = vunpack.c.l.bf16 %v272
        %319 = vadd.xlane.f32.xlu0 %v318
        %v320 = vpop.xlane.xlu0 %319
        %v321 = vadd.f32 %v317, %v320
        %vm322 = vcmask 7168
        %323 = vst.msk [vmem:[%s257] sm:$0xff] %vm322, %v321
        %p324 = scmp.eq.s32.totalorder %s28, 1
        // Predicated region
        $region41: #{tpu_custom_call.1} parent=27 // pred_check
          %p325 = pneg %p324
        $region42: #{tpu_custom_call.1} parent=27 // pred_check_branch
          %327 = sbr.rel (%p325) target = $region44
        $region43: #{tpu_custom_call.1} parent=27 // pred_region
          %v328 = vld [vmem:[#allocation2] sm:$0xff]
          %v329 = vsel %vm315, %v328, -inf
          %330 = vmax.xlane.f32.xlu0 %v329
          %v331 = vpop.xlane.xlu0 %330
          %v332 = vsub.f32 %v328, %v331
          %v333 = vmul.f32 %v332, 1.442695
          %v334 = vpow.pop %v333
          %v335 = vsel %vm315, %v334, 0.0
          %336 = vadd.xlane.f32.xlu0 %v335
          %v337 = vpop.xlane.xlu0 %336
          %v338 = vrcp.pop %v337
          %v339 = vmul.f32 %v334, %v338
          %v340 = vld [vmem:[#allocation6] sm:$0x3]
          %v342 = vsel %vm315, %v340, 0
          %344 = vmatprep.subr.mxu0 0.0
          %345 = vmatpush1.msra.mxu0 0.0
          %346 = vmatprep.subr.mxu0 0.0
          %347 = vmatpush1.msra.mxu0 0.0
          %348 = vmatprep.subr.mxu0 0.0
          %349 = vmatpush1.msra.mxu0 0.0
          %350 = vmatprep.subr.mxu0 0.0
          %351 = vmatpush1.msra.mxu0 0.0
          %352 = vmatprep.subr.mxu0 0.0
          %353 = vmatpush1.msra.mxu0 0.0
          %354 = vmatprep.subr.mxu0 0.0
          %355 = vmatpush1.msra.mxu0 0.0
          %356 = vmatprep.subr.mxu0 0.0
          %357 = vmatpush1.msra.mxu0 0.0
          %358 = vmatprep.subr.mxu0 0.0
          %359 = vmatpush1.msra.mxu0 0.0
          %360 = vmatprep.subr.mxu0 0.0
          %361 = vmatpush1.msra.mxu0 0.0
          %362 = vmatprep.subr.mxu0 0.0
          %363 = vmatpush1.msra.mxu0 0.0
          %364 = vmatprep.subr.mxu0 0.0
          %365 = vmatpush1.msra.mxu0 0.0
          %366 = vmatprep.subr.mxu0 0.0
          %367 = vmatpush1.msra.mxu0 0.0
          %368 = vmatprep.subr.mxu0 0.0
          %369 = vmatpush1.msra.mxu0 0.0
          %370 = vmatprep.subr.mxu0 0.0
          %371 = vmatpush1.msra.mxu0 0.0
          %372 = vmatprep.subr.mxu0 0.0
          %373 = vmatpush1.msra.mxu0 0.0
          %374 = vmatprep.subr.mxu0 0.0
          %375 = vmatpush1.msra.mxu0 %v339
          %376 = vmatprep.subr.mxu0 0.0
          %377 = vmatpush2.msra.mxu0 0.0
          %378 = vmatprep.subr.mxu0 0.0
          %379 = vmatpush2.msra.mxu0 0.0
          %380 = vmatprep.subr.mxu0 0.0
          %381 = vmatpush2.msra.mxu0 0.0
          %382 = vmatprep.subr.mxu0 0.0
          %383 = vmatpush2.msra.mxu0 0.0
          %384 = vmatprep.subr.mxu0 0.0
          %385 = vmatpush2.msra.mxu0 0.0
          %386 = vmatprep.subr.mxu0 0.0
          %387 = vmatpush2.msra.mxu0 0.0
          %388 = vmatprep.subr.mxu0 0.0
          %389 = vmatpush2.msra.mxu0 0.0
          %390 = vmatprep.subr.mxu0 0.0
          %391 = vmatpush2.msra.mxu0 0.0
          %392 = vmatprep.subr.mxu0 0.0
          %393 = vmatpush2.msra.mxu0 0.0
          %394 = vmatprep.subr.mxu0 0.0
          %395 = vmatpush2.msra.mxu0 0.0
          %396 = vmatprep.subr.mxu0 0.0
          %397 = vmatpush2.msra.mxu0 0.0
          %398 = vmatprep.subr.mxu0 0.0
          %399 = vmatpush2.msra.mxu0 0.0
          %400 = vmatprep.subr.mxu0 0.0
          %401 = vmatpush2.msra.mxu0 0.0
          %402 = vmatprep.subr.mxu0 0.0
          %403 = vmatpush2.msra.mxu0 0.0
          %404 = vmatprep.subr.mxu0 0.0
          %405 = vmatpush2.msra.mxu0 0.0
          %406 = vmatprep.subr.mxu0 0.0
          %407 = vmatpush2.msra.mxu0 0.0
          %408 = vmatprep.mubr.f32.mxu0 0.0
          %409 = vmatmul.mubr.f32.gmra.mxu0 %v342
          %v410 = vpop.f32.mrf.mxu0
          %v411 = vadd.f32 0.0, %v410
          %v412 = vpop.f32.mrf.mxu0
          %413 = vdwg.mxu0
          %v414 = vpack.c.bf16 %v411, %v411
          %vm415 = vcmask 57344
          %416 = vst.msk [vmem:[%s241] sm:$0x1] %vm415, %v414
          %v418 = vsel %vm315, %v411, 0
          %420 = vmatprep.subr.mxu0 0.0
          %421 = vmatpush1.msra.mxu0 0.0
          %422 = vmatprep.subr.mxu0 0.0
          %423 = vmatpush1.msra.mxu0 0.0
          %424 = vmatprep.subr.mxu0 0.0
          %425 = vmatpush1.msra.mxu0 0.0
          %426 = vmatprep.subr.mxu0 0.0
          %427 = vmatpush1.msra.mxu0 0.0
          %428 = vmatprep.subr.mxu0 0.0
          %429 = vmatpush1.msra.mxu0 0.0
          %430 = vmatprep.subr.mxu0 0.0
          %431 = vmatpush1.msra.mxu0 0.0
          %432 = vmatprep.subr.mxu0 0.0
          %433 = vmatpush1.msra.mxu0 0.0
          %434 = vmatprep.subr.mxu0 0.0
          %435 = vmatpush1.msra.mxu0 0.0
          %436 = vmatprep.subr.mxu0 0.0
          %437 = vmatpush1.msra.mxu0 0.0
          %438 = vmatprep.subr.mxu0 0.0
          %439 = vmatpush1.msra.mxu0 0.0
          %440 = vmatprep.subr.mxu0 0.0
          %441 = vmatpush1.msra.mxu0 0.0
          %442 = vmatprep.subr.mxu0 0.0
          %443 = vmatpush1.msra.mxu0 0.0
          %444 = vmatprep.subr.mxu0 0.0
          %445 = vmatpush1.msra.mxu0 0.0
          %446 = vmatprep.subr.mxu0 0.0
          %447 = vmatpush1.msra.mxu0 0.0
          %448 = vmatprep.subr.mxu0 0.0
          %449 = vmatpush1.msra.mxu0 0.0
          %450 = vmatprep.subr.mxu0 0.0
          %451 = vmatpush1.msra.mxu0 %v328
          %452 = vmatprep.subr.mxu0 0.0
          %453 = vmatpush2.msra.mxu0 0.0
          %454 = vmatprep.subr.mxu0 0.0
          %455 = vmatpush2.msra.mxu0 0.0
          %456 = vmatprep.subr.mxu0 0.0
          %457 = vmatpush2.msra.mxu0 0.0
          %458 = vmatprep.subr.mxu0 0.0
          %459 = vmatpush2.msra.mxu0 0.0
          %460 = vmatprep.subr.mxu0 0.0
          %461 = vmatpush2.msra.mxu0 0.0
          %462 = vmatprep.subr.mxu0 0.0
          %463 = vmatpush2.msra.mxu0 0.0
          %464 = vmatprep.subr.mxu0 0.0
          %465 = vmatpush2.msra.mxu0 0.0
          %466 = vmatprep.subr.mxu0 0.0
          %467 = vmatpush2.msra.mxu0 0.0
          %468 = vmatprep.subr.mxu0 0.0
          %469 = vmatpush2.msra.mxu0 0.0
          %470 = vmatprep.subr.mxu0 0.0
          %471 = vmatpush2.msra.mxu0 0.0
          %472 = vmatprep.subr.mxu0 0.0
          %473 = vmatpush2.msra.mxu0 0.0
          %474 = vmatprep.subr.mxu0 0.0
          %475 = vmatpush2.msra.mxu0 0.0
          %476 = vmatprep.subr.mxu0 0.0
          %477 = vmatpush2.msra.mxu0 0.0
          %478 = vmatprep.subr.mxu0 0.0
          %479 = vmatpush2.msra.mxu0 0.0
          %480 = vmatprep.subr.mxu0 0.0
          %481 = vmatpush2.msra.mxu0 0.0
          %482 = vmatprep.subr.mxu0 0.0
          %483 = vmatpush2.msra.mxu0 0.0
          %484 = vmatprep.mubr.f32.mxu0 0.0
          %485 = vmatmul.mubr.f32.gmra.mxu0 %v418
          %v486 = vpop.f32.mrf.mxu0
          %v487 = vadd.f32 0.0, %v486
          %v488 = vpop.f32.mrf.mxu0
          %489 = vdwg.mxu0
          %v490 = vmul.f32 %v487, %v411
          %vm491 = vcmask 58368
          %v492 = vsel %vm491, %v490, 0.0
          %493 = vadd.xlane.f32.xlu0 %v492
          %v494 = vpop.xlane.xlu0 %493
          %vm495 = vcmask 1024
          %496 = vst.msk [vmem:[%s261] sm:$0x3] %vm495, %v494
        $region44: #{tpu_custom_call.1} parent=27 // pred_fallthru
          _
        %s497 = sand.u32 %s92, 1
        %s498 = scalar_lea.sflag [#allocation5], %s497
        %s499 = sand.u32 %s92, 1
        %s500 = scalar_lea.vmem [#allocation8], %s499
        %p501 = scmp.lt.s32.totalorder %s27, 1
        %s502 = scalar_select %p501, %s27, 1
        %s503 = smul.addr %s502, 8
        %s504 = scalar_lea.vmem %s3, %s503
        %p505 = scmp.lt.s32.totalorder %s27, 1
        %s506 = scalar_select %p505, %s27, 1
        %s507 = smul.addr %s506, 2
        %s508 = scalar_lea.vmem %s4, %s507
        // Predicated region
        $region45: #{tpu_custom_call.1} parent=27 // pred_check
          %p509 = pneg %p102
        $region46: #{tpu_custom_call.1} parent=27 // pred_check_branch
          %511 = sbr.rel (%p509) target = $region48
        $region47: #{tpu_custom_call.1} parent=27 // pred_region
          %s513 = ssub.s32 16, 16
          %514 = vsyncadd %s498, %s513
          %s515 = smul.addr %s27, 16
          %s516 = scalar_lea.hbm %s2, %s515
          %s518 = sshll.u32 %s500, 4
          %s519 = int_to_ptr.vmem [resolvable:$true] %s518
          %521 = dma.vmem_to_hbm [thread:$0]  %s519, 16, %s516, %s498
        $region48: #{tpu_custom_call.1} parent=27 // pred_fallthru
          _
        // Predicated region
        $region49: #{tpu_custom_call.1} parent=27 // pred_check
          %p522 = pneg %p128
        $region50: #{tpu_custom_call.1} parent=27 // pred_check_branch
          %524 = sbr.rel (%p522) target = $region52
        $region51: #{tpu_custom_call.1} parent=27 // pred_region
          _
        $region52: #{tpu_custom_call.1} parent=27 // pred_fallthru
          _
        // Predicated region
        $region53: #{tpu_custom_call.1} parent=27 // pred_check
          %p525 = pneg %p154
        $region54: #{tpu_custom_call.1} parent=27 // pred_check_branch
          %527 = sbr.rel (%p525) target = $region56
        $region55: #{tpu_custom_call.1} parent=27 // pred_region
          _
        $region56: #{tpu_custom_call.1} parent=27 // pred_fallthru
          _
      $region28: #{tpu_custom_call.1} parent=5 // pred_fallthru
        _
      %p528 = scmp.le.s32.totalorder 2, %s18
      // Predicated region
      $region57: #{tpu_custom_call.1} parent=5 // pred_check
        %p529 = pneg %p528
      $region58: #{tpu_custom_call.1} parent=5 // pred_check_branch
        %531 = sbr.rel (%p529) target = $region60
      $region59: #{tpu_custom_call.1} parent=5 // pred_region
        %s532 = ssub.s32 %s18, 2
        // Predicated region
        $region61: #{tpu_custom_call.1} parent=59 // pred_check
          %p533 = pneg %p108
        $region62: #{tpu_custom_call.1} parent=59 // pred_check_branch
          %535 = sbr.rel (%p533) target = $region64
        $region63: #{tpu_custom_call.1} parent=59 // pred_region
          %s536 = sand.u32 %s93, 1
          %s537 = scalar_lea.sflag [#allocation5], %s536
          %s538 = sand.u32 %s93, 1
          %s539 = scalar_lea.vmem [#allocation8], %s538
          %540 = dma.done %s537, 16
        $region64: #{tpu_custom_call.1} parent=59 // pred_fallthru
          _
        // Predicated region
        $region65: #{tpu_custom_call.1} parent=59 // pred_check
          %p541 = pneg %p134
        $region66: #{tpu_custom_call.1} parent=59 // pred_check_branch
          %543 = sbr.rel (%p541) target = $region68
        $region67: #{tpu_custom_call.1} parent=59 // pred_region
          %p544 = scmp.lt.s32.totalorder %s29, 1
          %s545 = scalar_select %p544, %s29, 1
          %s546 = smul.addr %s545, 8
          %s547 = scalar_lea.vmem %s3, %s546
        $region68: #{tpu_custom_call.1} parent=59 // pred_fallthru
          _
        // Predicated region
        $region69: #{tpu_custom_call.1} parent=59 // pred_check
          %p548 = pneg %p160
        $region70: #{tpu_custom_call.1} parent=59 // pred_check_branch
          %550 = sbr.rel (%p548) target = $region72
        $region71: #{tpu_custom_call.1} parent=59 // pred_region
          %p551 = scmp.lt.s32.totalorder %s29, 1
          %s552 = scalar_select %p551, %s29, 1
          %s553 = smul.addr %s552, 2
          %s554 = scalar_lea.vmem %s4, %s553
        $region72: #{tpu_custom_call.1} parent=59 // pred_fallthru
          _
      $region60: #{tpu_custom_call.1} parent=5 // pred_fallthru
        _
    $region6: #{tpu_custom_call.1} parent=1 // loop_footer
      %s22 = sadd.s32 1, %s18
    $region7: #{tpu_custom_call.1} parent=1 // loop_footer_branch
      %17 = sbr.rel target = $region3
    $region8: #{tpu_custom_call.1} parent=1 // loop_exit
      _
    %555 = vsyncpa [#allocation4], 1
    %s556 = scalar_lea.sflag [#allocation4], 1
    %557 = vsyncpa %s556, 1
    %558 = vsyncpa [#allocation7], 1
    %559 = vsyncpa [#allocation5], 1
    %s560 = scalar_lea.sflag [#allocation5], 1
    %561 = vsyncpa %s560, 1

</llo_original>
